<compile_context>
chip_gen: v7x
topology: tpu7x:2x2x1
jax: 0.10.0
libtpu: 0.0.40
codegen_flags: <defaults>
</compile_context>

<pallas_src>
import functools

import jax
import jax.numpy as jnp
from jax.experimental import pallas as pl
from jax.experimental.pallas import tpu as pltpu

HIDDEN = (100, 50, 100, 1)   # logical layer output sizes of the PyTorch Net
PAD_N = 128                  # every layer's N padded to one MXU lane tile
MAX_TILE_B = 1024            # batch-tile cap (VMEM use stays trivial on all generations)
TARGET_GRID_STEPS = 4        # keep >=4 steps when batch allows (v7x: 2 TCs x >=2 steps)


def _round_up(x, m):
    return (x + m - 1) // m * m


def _choose_tile_b(batch):
    """Largest useful 128-multiple batch tile.

    Per-grid-step fixed overhead dominates tiny tiles, so go big; but keep
    >= TARGET_GRID_STEPS steps when the batch allows so the "parallel" axis feeds both
    v7x TensorCores and the pipeline still overlaps DMA with compute.
    """
    b128 = _round_up(max(batch, 1), PAD_N)
    step_cap = max(PAD_N, (b128 // TARGET_GRID_STEPS) // PAD_N * PAD_N)
    return min(MAX_TILE_B, b128, step_cap)


def _mlp_kernel(x_ref, w_ref, b_ref, o_ref, *, row_offsets):
    """4-layer MLP on one (TILE_B, in_features) batch tile.

    x_ref: (TILE_B, in_p) bf16 input tile (already padded + cast by the wrapper).
    w_ref: packed bf16 weights; rows [row_offsets[k], row_offsets[k+1]) hold layer k's
           (K_k, 128) block (zero-padded; offsets are bf16 (16,128)-tile aligned).
    b_ref: packed f32 biases, row k = layer k's bias (padded lanes are zero).
    o_ref: (1, TILE_B) f32 compact output row (the real fc4 scalar per batch row).
    """
    h = x_ref[...]                                   # bf16 MXU operand
    n_layers = len(row_offsets) - 1
    for k in range(n_layers):                        # static unroll over 4 layers
        lo, hi = row_offsets[k], row_offsets[k + 1]
        acc = jnp.dot(h, w_ref[lo:hi, :], preferred_element_type=jnp.float32)
        acc = acc + b_ref[k:k + 1, :]                # f32 bias-add on the VPU
        if k < n_layers - 1:
            h = jnp.maximum(acc, 0.0).astype(jnp.bfloat16)   # f32 ReLU -> bf16 operand
        else:
            # Real fc4 output is column 0 of acc; store it as a lane-dense (1, TILE_B)
            # row (cheap XLU transpose) instead of a (TILE_B, 128) f32 slab.
            o_ref[...] = jnp.transpose(acc)[0:1, :]


def init_params(key, input_size):
    """Deterministic init mirroring PyTorch Linear's U(-1/sqrt(fan_in), 1/sqrt(fan_in)).

    Weights stored pre-transposed as (in, out); biases as (1, out). float32.
    """
    in_dims = (input_size,) + HIDDEN[:-1]
    params = {}
    for i, (fan_in, fan_out) in enumerate(zip(in_dims, HIDDEN), start=1):
        key, kw, kb = jax.random.split(key, 3)
        bound = 1.0 / jnp.sqrt(jnp.float32(fan_in))
        params[f"w{i}"] = jax.random.uniform(
            kw, (fan_in, fan_out), jnp.float32, -bound, bound)
        params[f"b{i}"] = jax.random.uniform(
            kb, (1, fan_out), jnp.float32, -bound, bound)
    return params


def pack_params(params, input_size):
    """Zero-pad every layer to N=128 (K tile-aligned for bf16) and pack into 2 buffers."""
    in_dims_padded = [_round_up(input_size, 16)] + [PAD_N] * (len(HIDDEN) - 1)
    ws, bs = [], []
    for k, din_p in enumerate(in_dims_padded, start=1):
        w = params[f"w{k}"].astype(jnp.float32)
        b = params[f"b{k}"].astype(jnp.float32).reshape(1, -1)
        w = jnp.pad(w, ((0, din_p - w.shape[0]), (0, PAD_N - w.shape[1])))
        b = jnp.pad(b, ((0, 0), (0, PAD_N - b.shape[1])))
        ws.append(w.astype(jnp.bfloat16))
        bs.append(b)
    w_packed = jnp.concatenate(ws, axis=0)       # (32 + 128 + 128 + 128, 128) bf16
    b_packed = jnp.concatenate(bs, axis=0)       # (4, 128) f32
    row_offsets = [0]
    for w in ws:
        row_offsets.append(row_offsets[-1] + w.shape[0])
    return w_packed, b_packed, tuple(row_offsets)


def _probe_kernel(x_ref, w_ref, o_ref):
    o_ref[...] = x_ref[...] + w_ref[...]


def _single_buffer_resident_supported():
    """Check (outside jit) whether pl.Buffered(1) resident inputs lower on this JAX/TPU."""
    try:
        x = jnp.zeros((16, 128), jnp.float32)
        w = jnp.zeros((8, 128), jnp.float32)
        out = pl.pallas_call(
            _probe_kernel,
            out_shape=jax.ShapeDtypeStruct((16, 128), jnp.float32),
            grid=(2,),
            in_specs=[pl.BlockSpec((8, 128), lambda i: (i, 0)),
                      pl.BlockSpec((8, 128), lambda i: (0, 0),
                                   pipeline_mode=pl.Buffered(1))],
            out_specs=pl.BlockSpec((8, 128), lambda i: (i, 0)),
        )(x, w)
        jax.block_until_ready(out)
        return True
    except Exception:
        return False


def net_forward(x, w_packed, b_packed, *, row_offsets, single_buffer_resident=False):
    """Forward pass of Net. x: (B, input_size) -> (B, 1) f32."""
    B = x.shape[0]
    in_p = row_offsets[1]                        # padded input-feature dim
    tile_b = _choose_tile_b(B)
    B_p = _round_up(B, tile_b)
    num_tiles = B_p // tile_b

    # Pad batch/features and stream the activations in bf16: the cast fuses with the pad
    # and halves the per-step input DMA bytes (the only non-resident input stream).
    x = jnp.pad(x.astype(jnp.bfloat16), ((0, B_p - B), (0, in_p - x.shape[1])))

    def _resident_spec(shape):
        # Weights/biases never change across grid steps (constant index_map); skip the
        # useless second pipeline buffer when this JAX supports single-buffering.
        if single_buffer_resident:
            return pl.BlockSpec(shape, lambda i: (0, 0), pipeline_mode=pl.Buffered(1))
        return pl.BlockSpec(shape, lambda i: (0, 0))

    kernel = functools.partial(_mlp_kernel, row_offsets=row_offsets)

    out = pl.pallas_call(
        kernel,
        out_shape=jax.ShapeDtypeStruct((num_tiles, 1, tile_b), jnp.float32),
        grid=(num_tiles,),
        in_specs=[
            pl.BlockSpec((tile_b, in_p), lambda i: (i, 0)),   # x tile (pipelined, bf16)
            _resident_spec(w_packed.shape),                   # weights: VMEM-resident
            _resident_spec(b_packed.shape),                   # biases:  VMEM-resident
        ],
        # Compact lane-dense output: one (1, TILE_B) f32 row per grid step.
        out_specs=pl.BlockSpec((None, 1, tile_b), lambda i: (i, 0, 0)),
        compiler_params=pltpu.CompilerParams(
            dimension_semantics=("parallel",),     # batch axis splits across v7x's 2 TCs
            vmem_limit_bytes=32 * 1024 * 1024),    # explicit scoped-VMEM budget
    )(x, w_packed, b_packed)

    return out.reshape(-1)[:B].reshape(B, 1)


def reference_forward_f32(x, params):
    h = jnp.maximum(x @ params["w1"] + params["b1"], 0.0)
    h = jnp.maximum(h @ params["w2"] + params["b2"], 0.0)
    h = jnp.maximum(h @ params["w3"] + params["b3"], 0.0)
    return h @ params["w4"] + params["b4"]


def reference_forward_bf16(x, params):
    """Same math as the kernel (bf16 matmul operands, f32 accumulate/elementwise)."""
    def bdot(a, w):
        return jnp.dot(a.astype(jnp.bfloat16), w.astype(jnp.bfloat16),
                       preferred_element_type=jnp.float32)
    h = jnp.maximum(bdot(x, params["w1"]) + params["b1"], 0.0)
    h = jnp.maximum(bdot(h, params["w2"]) + params["b2"], 0.0)
    h = jnp.maximum(bdot(h, params["w3"]) + params["b3"], 0.0)
    return bdot(h, params["w4"]) + params["b4"]


if __name__ == "__main__":
    key = jax.random.PRNGKey(0)
    key, kx = jax.random.split(key)

    # Small MLP; 512 rows -> 4 parallel grid steps of 128 rows each.
    batch, input_size = 512, 32
    x = jax.random.normal(kx, (batch, input_size), jnp.float32)
    params = init_params(key, input_size)
    w_packed, b_packed, row_offsets = pack_params(params, input_size)

    single_buf = _single_buffer_resident_supported()

    fwd = jax.jit(functools.partial(net_forward, row_offsets=row_offsets,
                                    single_buffer_resident=single_buf))
    out = jax.block_until_ready(fwd(x, w_packed, b_packed))
    assert out.shape == (batch, 1)

    ref_bf16 = reference_forward_bf16(x, params)
    ref_f32 = reference_forward_f32(x, params)
    assert jnp.allclose(out, ref_bf16, atol=2e-3, rtol=2e-3), (
        float(jnp.max(jnp.abs(out - ref_bf16))))
    assert jnp.allclose(out, ref_f32, atol=5e-2, rtol=5e-2), (
        float(jnp.max(jnp.abs(out - ref_f32))))

    # Ragged batch: exercises batch padding + slice-off of padded rows.
    x_small = jax.random.normal(jax.random.PRNGKey(1), (33, input_size), jnp.float32)
    out_small = jax.block_until_ready(fwd(x_small, w_packed, b_packed))
    assert out_small.shape == (33, 1)
    assert jnp.allclose(out_small, reference_forward_f32(x_small, params),
                        atol=5e-2, rtol=5e-2)

    print("KERNEL_OK")
</pallas_src>

<mosaic_0001>
module attributes {stable_mosaic.version = 11 : i64} {
  func.func @_probe_kernel(%arg0: i32, %arg1: memref<8x128xf32, #tpu.memory_space<vmem>>, %arg2: memref<8x128xf32, #tpu.memory_space<vmem>>, %arg3: memref<8x128xf32, #tpu.memory_space<vmem>>) attributes {dimension_semantics = [#tpu.dimension_semantics<arbitrary>], iteration_bounds = array<i64: 2>, scalar_prefetch = 0 : i64, scratch_operands = 0 : i64, tpu.core_type = #tpu.core_type<tc>, window_params = [{transform_indices = @transform_0, window_bounds = array<i64: 8, 128>}, {pipeline_mode = #tpu.pipeline_mode<synchronous>, transform_indices = @transform_1, window_bounds = array<i64: 8, 128>}, {transform_indices = @transform_2, window_bounds = array<i64: 8, 128>}]} {
    %c0 = arith.constant 0 : index
    %c0_0 = arith.constant 0 : index
    %0 = vector.load %arg1[%c0, %c0_0] : memref<8x128xf32, #tpu.memory_space<vmem>>, vector<8x128xf32>
    %c0_1 = arith.constant 0 : index
    %c0_2 = arith.constant 0 : index
    %1 = vector.load %arg2[%c0_1, %c0_2] : memref<8x128xf32, #tpu.memory_space<vmem>>, vector<8x128xf32>
    %2 = arith.addf %0, %1 : vector<8x128xf32>
    %c0_3 = arith.constant 0 : index
    %c0_4 = arith.constant 0 : index
    %3 = vector.load %arg3[%c0_3, %c0_4] : memref<8x128xf32, #tpu.memory_space<vmem>>, vector<8x128xf32>
    tpu.vector_store %arg3[%c0_3, %c0_4], %2 {strides = array<i32>} : memref<8x128xf32, #tpu.memory_space<vmem>>, vector<8x128xf32>,
    return
  }
  func.func @transform_0(%arg0: i32) -> (i32, i32) {
    %c0_i32 = arith.constant 0 : i32
    %c0_i32_0 = arith.constant 0 : i32
    return %arg0, %c0_i32 : i32, i32
  }
  func.func @transform_1(%arg0: i32) -> (i32, i32) {
    %c0_i32 = arith.constant 0 : i32
    %c0_i32_0 = arith.constant 0 : i32
    %c0_i32_1 = arith.constant 0 : i32
    return %c0_i32, %c0_i32_0 : i32, i32
  }
  func.func @transform_2(%arg0: i32) -> (i32, i32) {
    %c0_i32 = arith.constant 0 : i32
    %c0_i32_0 = arith.constant 0 : i32
    return %arg0, %c0_i32 : i32, i32
  }
}

module attributes {stable_mosaic.version = 11 : i64} {
  func.func @_mlp_kernel(%arg0: i32, %arg1: memref<128x32xbf16, #tpu.memory_space<vmem>>, %arg2: memref<416x128xbf16, #tpu.memory_space<vmem>>, %arg3: memref<4x128xf32, #tpu.memory_space<vmem>>, %arg4: memref<1x1x128xf32, #tpu.memory_space<vmem>>) attributes {dimension_semantics = [#tpu.dimension_semantics<parallel>], iteration_bounds = array<i64: 4>, scalar_prefetch = 0 : i64, scratch_operands = 0 : i64, tpu.core_type = #tpu.core_type<tc>, window_params = [{transform_indices = @transform_0, window_bounds = array<i64: 128, 32>}, {pipeline_mode = #tpu.pipeline_mode<synchronous>, transform_indices = @transform_1, window_bounds = array<i64: 416, 128>}, {pipeline_mode = #tpu.pipeline_mode<synchronous>, transform_indices = @transform_2, window_bounds = array<i64: 4, 128>}, {transform_indices = @transform_3, window_bounds = array<i64: 1, 1, 128>}]} {
    %c0 = arith.constant 0 : index
    %c0_0 = arith.constant 0 : index
    %0 = vector.load %arg1[%c0, %c0_0] : memref<128x32xbf16, #tpu.memory_space<vmem>>, vector<128x32xbf16>
    %c0_1 = arith.constant 0 : index
    %c0_2 = arith.constant 0 : index
    %1 = vector.load %arg2[%c0_1, %c0_2] : memref<416x128xbf16, #tpu.memory_space<vmem>>, vector<32x128xbf16>
    %cst = arith.constant dense<0.000000e+00> : vector<128x128xf32>
    %2 = tpu.matmul %0, %1, %cst {dimension_numbers = #tpu.dot_dimension_numbers<[1], [0], [0], [1], [0, 0, 1, 1], [], []>} : vector<128x32xbf16>, vector<32x128xbf16>, vector<128x128xf32> -> vector<128x128xf32>
    %c0_3 = arith.constant 0 : index
    %c0_4 = arith.constant 0 : index
    %3 = vector.load %arg3[%c0_3, %c0_4] : memref<4x128xf32, #tpu.memory_space<vmem>>, vector<1x128xf32>
    %4 = vector.broadcast %3 : vector<1x128xf32> to vector<128x128xf32>
    %5 = arith.addf %2, %4 : vector<128x128xf32>
    %cst_5 = arith.constant 0.000000e+00 : f32
    %6 = vector.broadcast %cst_5 : f32 to vector<128x128xf32>
    %7 = arith.maximumf %5, %6 : vector<128x128xf32>
    %8 = arith.truncf %7 : vector<128x128xf32> to vector<128x128xbf16>
    %c32 = arith.constant 32 : index
    %c0_6 = arith.constant 0 : index
    %9 = vector.load %arg2[%c32, %c0_6] : memref<416x128xbf16, #tpu.memory_space<vmem>>, vector<128x128xbf16>
    %cst_7 = arith.constant dense<0.000000e+00> : vector<128x128xf32>
    %10 = tpu.matmul %8, %9, %cst_7 {dimension_numbers = #tpu.dot_dimension_numbers<[1], [0], [0], [1], [0, 0, 1, 1], [], []>} : vector<128x128xbf16>, vector<128x128xbf16>, vector<128x128xf32> -> vector<128x128xf32>
    %c1 = arith.constant 1 : index
    %c0_8 = arith.constant 0 : index
    %11 = vector.load %arg3[%c1, %c0_8] : memref<4x128xf32, #tpu.memory_space<vmem>>, vector<1x128xf32>
    %12 = vector.broadcast %11 : vector<1x128xf32> to vector<128x128xf32>
    %13 = arith.addf %10, %12 : vector<128x128xf32>
    %cst_9 = arith.constant 0.000000e+00 : f32
    %14 = vector.broadcast %cst_9 : f32 to vector<128x128xf32>
    %15 = arith.maximumf %13, %14 : vector<128x128xf32>
    %16 = arith.truncf %15 : vector<128x128xf32> to vector<128x128xbf16>
    %c160 = arith.constant 160 : index
    %c0_10 = arith.constant 0 : index
    %17 = vector.load %arg2[%c160, %c0_10] : memref<416x128xbf16, #tpu.memory_space<vmem>>, vector<128x128xbf16>
    %cst_11 = arith.constant dense<0.000000e+00> : vector<128x128xf32>
    %18 = tpu.matmul %16, %17, %cst_11 {dimension_numbers = #tpu.dot_dimension_numbers<[1], [0], [0], [1], [0, 0, 1, 1], [], []>} : vector<128x128xbf16>, vector<128x128xbf16>, vector<128x128xf32> -> vector<128x128xf32>
    %c2 = arith.constant 2 : index
    %c0_12 = arith.constant 0 : index
    %19 = vector.load %arg3[%c2, %c0_12] : memref<4x128xf32, #tpu.memory_space<vmem>>, vector<1x128xf32>
    %20 = vector.broadcast %19 : vector<1x128xf32> to vector<128x128xf32>
    %21 = arith.addf %18, %20 : vector<128x128xf32>
    %cst_13 = arith.constant 0.000000e+00 : f32
    %22 = vector.broadcast %cst_13 : f32 to vector<128x128xf32>
    %23 = arith.maximumf %21, %22 : vector<128x128xf32>
    %24 = arith.truncf %23 : vector<128x128xf32> to vector<128x128xbf16>
    %c288 = arith.constant 288 : index
    %c0_14 = arith.constant 0 : index
    %25 = vector.load %arg2[%c288, %c0_14] : memref<416x128xbf16, #tpu.memory_space<vmem>>, vector<128x128xbf16>
    %cst_15 = arith.constant dense<0.000000e+00> : vector<128x128xf32>
    %26 = tpu.matmul %24, %25, %cst_15 {dimension_numbers = #tpu.dot_dimension_numbers<[1], [0], [0], [1], [0, 0, 1, 1], [], []>} : vector<128x128xbf16>, vector<128x128xbf16>, vector<128x128xf32> -> vector<128x128xf32>
    %c3 = arith.constant 3 : index
    %c0_16 = arith.constant 0 : index
    %27 = vector.load %arg3[%c3, %c0_16] : memref<4x128xf32, #tpu.memory_space<vmem>>, vector<1x128xf32>
    %28 = vector.broadcast %27 : vector<1x128xf32> to vector<128x128xf32>
    %29 = arith.addf %26, %28 : vector<128x128xf32>
    %30 = tpu.transpose %29, [1, 0] : vector<128x128xf32> -> vector<128x128xf32>
    %31 = vector.extract_strided_slice %30 {offsets = [0, 0], sizes = [1, 128], strides = [1, 1]} : vector<128x128xf32> to vector<1x128xf32>
    %c0_17 = arith.constant 0 : index
    %c0_18 = arith.constant 0 : index
    %c0_19 = arith.constant 0 : index
    %32 = vector.load %arg4[%c0_17, %c0_18, %c0_19] : memref<1x1x128xf32, #tpu.memory_space<vmem>>, vector<1x1x128xf32>
    %33 = vector.shape_cast %32 : vector<1x1x128xf32> to vector<1x128xf32>
    %34 = vector.shape_cast %31 : vector<1x128xf32> to vector<1x1x128xf32>
    tpu.vector_store %arg4[%c0_17, %c0_18, %c0_19], %34 {strides = array<i32>} : memref<1x1x128xf32, #tpu.memory_space<vmem>>, vector<1x1x128xf32>,
    return
  }
  func.func @transform_0(%arg0: i32) -> (i32, i32) {
    %c0_i32 = arith.constant 0 : i32
    %c0_i32_0 = arith.constant 0 : i32
    return %arg0, %c0_i32 : i32, i32
  }
  func.func @transform_1(%arg0: i32) -> (i32, i32) {
    %c0_i32 = arith.constant 0 : i32
    %c0_i32_0 = arith.constant 0 : i32
    %c0_i32_1 = arith.constant 0 : i32
    return %c0_i32, %c0_i32_0 : i32, i32
  }
  func.func @transform_2(%arg0: i32) -> (i32, i32) {
    %c0_i32 = arith.constant 0 : i32
    %c0_i32_0 = arith.constant 0 : i32
    %c0_i32_1 = arith.constant 0 : i32
    return %c0_i32, %c0_i32_0 : i32, i32
  }
  func.func @transform_3(%arg0: i32) -> (i32, i32, i32) {
    %c0_i32 = arith.constant 0 : i32
    %c0_i32_0 = arith.constant 0 : i32
    %c0_i32_1 = arith.constant 0 : i32
    return %arg0, %c0_i32, %c0_i32_0 : i32, i32, i32
  }
}

</mosaic_0001>

<llo_original>
// kernel: tpu_custom_call.1
$region0: #{tpu_custom_call.1}
  #allocation0 [shape = 'u32[]', space=smem, size = 0x4, offset = 0x4, fixed_abs, tag = 'smem constant byte address 0x4 - core index']
  #allocation1 [shape = 'u32[144,128]{1,0:T(1,128)}', space=vmem, size = 0x12000, scoped, tag = 'internal scratch']
  %s0 = inlined_call_operand.hbm [shape: f32[16,128], index: 0, kind: input, shape index: {}]
  %s1 = inlined_call_operand.hbm [shape: f32[8,128], index: 1, kind: input, shape index: {}]
  %s2 = inlined_call_operand.hbm [shape: f32[16,128], index: 2, kind: output, shape index: {}]
  %s3 = sld [smem:[#allocation0]]
  $region49: #{tpu_custom_call.1} parent=0
    _
  %s5 = ssub.s32 1, %s3
  %s6 = scalar_select 0, %s5, %s3
  $region1: #{tpu_custom_call.1} parent=0
    #allocation2 [shape = 'u8[8192]{0}', space=vmem, size = 0x2000, scoped, tag = 'input window, operand 0']
    #allocation3 [shape = 's32[2]{0}', space=sflag, size = 0x8, scoped, tag = 'scoped memory for tpu_custom_call.1']
    #allocation4 [shape = 's32[2]{0}', space=sflag, size = 0x8, scoped, tag = 'scoped memory for tpu_custom_call.1']
    #allocation5 [shape = 'u8[4096]{0}', space=vmem, size = 0x1000, scoped, tag = 'input window, operand 1, single buffered']
    #allocation6 [shape = 's32[1]{0}', space=sflag, size = 0x4, scoped, tag = 'scoped memory for tpu_custom_call.1']
    #allocation7 [shape = 'u8[8192]{0}', space=vmem, size = 0x2000, scoped, tag = 'output window, operand 0']
    %7 = vsyncpa [#allocation3], 0
    %s8 = scalar_lea.sflag [#allocation3], 1
    %9 = vsyncpa %s8, 0
    %10 = vsyncpa [#allocation6], 0
    %11 = vsyncpa [#allocation4], 0
    %s12 = scalar_lea.sflag [#allocation4], 1
    %13 = vsyncpa %s12, 0
    loop: start=0, step=1, limit=4
    $region2: #{tpu_custom_call.1} parent=1 // loop_pre_header
      _
    $region3: #{tpu_custom_call.1} parent=1 // loop_header
      %s15 = sphi 0, %s19
      %p16 = scmp.ge.s32.totalorder %s15, 4
      %s25 = sphi 0, %s27
      %s28 = sphi 0, %s25
      %s29 = sphi 0, %s28
      %s45 = sphi 0, %s29
      %s49 = sphi 0, %s49
      %s51 = sphi 0, %s49
      %s52 = sphi 0, %s51
      %s66 = sphi 0, %s52
      %s72 = sphi 0, %s74
      %s75 = sphi 0, %s72
      %s76 = sphi 0, %s75
      %s92 = sphi 0, %s76
    $region4: #{tpu_custom_call.1} parent=1 // loop_header_branch
      %18 = sbr.rel (%p16) target = $region8
    $region5: #{tpu_custom_call.1} parent=1 // loop_body
      %s20 = ssub.s32 %s15, 1
      %s21 = ssub.s32 %s15, 2
      %s22 = sadd.s32 %s15, 1
      %s23 = ssub.s32 %s15, %s22
      %p24 = scmp.eq.s32.totalorder %s23, 0
      %s26 = sadd.s32 %s25, 1
      %s27 = scalar_select %p24, %s25, %s26
      %p30 = pneg %p24
      %p31 = scmp.eq.s32.totalorder %s15, 1
      %p32 = por %p30, %p31
      %p33 = scmp.ne.s32.totalorder %s25, %s28
      %p34 = scmp.eq.s32.totalorder %s15, 0
      %p35 = por %p33, %p34
      %p36 = scmp.ne.s32.totalorder %s25, %s28
      %p37 = scmp.eq.s32.totalorder %s20, 1
      %p38 = por %p36, %p37
      %p39 = scmp.ne.s32.totalorder %s28, %s29
      %p40 = scmp.eq.s32.totalorder %s20, 0
      %p41 = por %p39, %p40
      %p42 = scmp.ne.s32.totalorder %s28, %s29
      %p43 = scmp.eq.s32.totalorder %s21, 1
      %p44 = por %p42, %p43
      %p46 = scmp.ne.s32.totalorder %s29, %s45
      %p47 = scmp.eq.s32.totalorder %s21, 0
      %p48 = por %p46, %p47
      %s50 = sadd.s32 %s49, 1
      %p53 = scmp.eq.s32.totalorder %s15, 1
      %p54 = scmp.ne.s32.totalorder %s49, %s51
      %p55 = scmp.eq.s32.totalorder %s15, 0
      %p56 = por %p54, %p55
      %p57 = scmp.ne.s32.totalorder %s49, %s51
      %p58 = scmp.eq.s32.totalorder %s20, 1
      %p59 = por %p57, %p58
      %p60 = scmp.ne.s32.totalorder %s51, %s52
      %p61 = scmp.eq.s32.totalorder %s20, 0
      %p62 = por %p60, %p61
      %p63 = scmp.ne.s32.totalorder %s51, %s52
      %p64 = scmp.eq.s32.totalorder %s21, 1
      %p65 = por %p63, %p64
      %p67 = scmp.ne.s32.totalorder %s52, %s66
      %p68 = scmp.eq.s32.totalorder %s21, 0
      %p69 = por %p67, %p68
      %s70 = ssub.s32 %s15, %s22
      %p71 = scmp.eq.s32.totalorder %s70, 0
      %s73 = sadd.s32 %s72, 1
      %s74 = scalar_select %p71, %s72, %s73
      %p77 = pneg %p71
      %p78 = scmp.eq.s32.totalorder %s15, 1
      %p79 = por %p77, %p78
      %p80 = scmp.ne.s32.totalorder %s72, %s75
      %p81 = scmp.eq.s32.totalorder %s15, 0
      %p82 = por %p80, %p81
      %p83 = scmp.ne.s32.totalorder %s72, %s75
      %p84 = scmp.eq.s32.totalorder %s20, 1
      %p85 = por %p83, %p84
      %p86 = scmp.ne.s32.totalorder %s75, %s76
      %p87 = scmp.eq.s32.totalorder %s20, 0
      %p88 = por %p86, %p87
      %p89 = scmp.ne.s32.totalorder %s75, %s76
      %p90 = scmp.eq.s32.totalorder %s21, 1
      %p91 = por %p89, %p90
      %p93 = scmp.ne.s32.totalorder %s76, %s92
      %p94 = scmp.eq.s32.totalorder %s21, 0
      %p95 = por %p93, %p94
      %p96 = scmp.le.s32.totalorder 1, %s15
      %p97 = scmp.lt.s32.totalorder %s15, 3
      %p98 = pnand %p96, %p97
      %p99 = pneg %p98
      // Predicated region
      $region9: #{tpu_custom_call.1} parent=5 // pred_check
        _
      $region10: #{tpu_custom_call.1} parent=5 // pred_check_branch
        %101 = sbr.rel (%p98) target = $region12
      $region11: #{tpu_custom_call.1} parent=5 // pred_region
        %s102 = ssub.s32 %s15, 1
        // Predicated region
        $region13: #{tpu_custom_call.1} parent=11 // pred_check
          %p103 = pneg %p62
        $region14: #{tpu_custom_call.1} parent=11 // pred_check_branch
          %105 = sbr.rel (%p103) target = $region16
        $region15: #{tpu_custom_call.1} parent=11 // pred_region
          %s107 = ssub.s32 128, 128
          %108 = vsyncadd [#allocation6], %s107
          %s110 = sshll.u32 [#allocation5], 4
          %s111 = int_to_ptr.vmem [resolvable:$true] %s110
          %113 = dma.hbm_to_vmem [thread:$0]  %s1, 128, %s111, [#allocation6]
        $region16: #{tpu_custom_call.1} parent=11 // pred_fallthru
          _
      $region12: #{tpu_custom_call.1} parent=5 // pred_fallthru
        _
      %p114 = scmp.lt.s32.totalorder %s15, 2
      // Predicated region
      $region17: #{tpu_custom_call.1} parent=5 // pred_check
        %p115 = pneg %p114
      $region18: #{tpu_custom_call.1} parent=5 // pred_check_branch
        %117 = sbr.rel (%p115) target = $region20
      $region19: #{tpu_custom_call.1} parent=5 // pred_region
        // Predicated region
        $region21: #{tpu_custom_call.1} parent=19 // pred_check
          %p118 = pneg %p35
        $region22: #{tpu_custom_call.1} parent=19 // pred_check_branch
          %120 = sbr.rel (%p118) target = $region24
        $region23: #{tpu_custom_call.1} parent=19 // pred_region
          %s121 = sand.u32 %s25, 1
          %s122 = scalar_lea.sflag [#allocation3], %s121
          %s123 = sand.u32 %s25, 1
          %s124 = smul.addr %s123, 8
          %s125 = scalar_lea.vmem [#allocation2], %s124
          %s127 = ssub.s32 128, 128
          %128 = vsyncadd %s122, %s127
          %s129 = smul.addr %s15, 128
          %s130 = scalar_lea.hbm %s0, %s129
          %s132 = sshll.u32 %s125, 4
          %s133 = int_to_ptr.vmem [resolvable:$true] %s132
          %135 = dma.hbm_to_vmem [thread:$0]  %s130, 128, %s133, %s122
        $region24: #{tpu_custom_call.1} parent=19 // pred_fallthru
          _
      $region20: #{tpu_custom_call.1} parent=5 // pred_fallthru
        _
      %p136 = scmp.le.s32.totalorder 1, %s15
      %p137 = scmp.lt.s32.totalorder %s15, 3
      %p138 = pnand %p136, %p137
      %p139 = pneg %p138
      // Predicated region
      $region25: #{tpu_custom_call.1} parent=5 // pred_check
        _
      $region26: #{tpu_custom_call.1} parent=5 // pred_check_branch
        %141 = sbr.rel (%p138) target = $region28
      $region27: #{tpu_custom_call.1} parent=5 // pred_region
        %s142 = ssub.s32 %s15, 1
        %s143 = sand.u32 %s28, 1
        %s144 = scalar_lea.sflag [#allocation3], %s143
        %s145 = sand.u32 %s28, 1
        %s146 = smul.addr %s145, 8
        %s147 = scalar_lea.vmem [#allocation2], %s146
        // Predicated region
        $region29: #{tpu_custom_call.1} parent=27 // pred_check
          %p148 = pneg %p41
        $region30: #{tpu_custom_call.1} parent=27 // pred_check_branch
          %150 = sbr.rel (%p148) target = $region32
        $region31: #{tpu_custom_call.1} parent=27 // pred_region
          %151 = dma.done %s144, 128
        $region32: #{tpu_custom_call.1} parent=27 // pred_fallthru
          _
        // Predicated region
        $region33: #{tpu_custom_call.1} parent=27 // pred_check
          %p152 = pneg %p62
        $region34: #{tpu_custom_call.1} parent=27 // pred_check_branch
          %154 = sbr.rel (%p152) target = $region36
        $region35: #{tpu_custom_call.1} parent=27 // pred_region
          %155 = dma.done [#allocation6], 128
        $region36: #{tpu_custom_call.1} parent=27 // pred_fallthru
          _
        %s156 = sand.u32 %s28, 1
        %s157 = scalar_lea.sflag [#allocation3], %s156
        %s158 = sand.u32 %s28, 1
        %s159 = smul.addr %s158, 8
        %s160 = scalar_lea.vmem [#allocation2], %s159
        %p161 = pneg %p41
        %p162 = pneg %p38
        %p163 = pneg %p62
        %p164 = pneg %p59
        %p165 = pneg %p88
        %p166 = pneg %p85
        %s167 = sand.u32 %s75, 1
        %s168 = scalar_lea.sflag [#allocation4], %s167
        %s169 = sand.u32 %s75, 1
        %s170 = smul.addr %s169, 8
        %s171 = scalar_lea.vmem [#allocation7], %s170
        %v172 = vld [vmem:[%s147] sm:$0xff]
        %v173 = vld [vmem:[#allocation5] sm:$0xff]
        %v174 = vadd.f32 %v172, %v173
        %175 = vst [vmem:[%s171] sm:$0xff] %v174
        %s176 = sand.u32 %s75, 1
        %s177 = scalar_lea.sflag [#allocation4], %s176
        %s178 = sand.u32 %s75, 1
        %s179 = smul.addr %s178, 8
        %s180 = scalar_lea.vmem [#allocation7], %s179
        // Predicated region
        $region37: #{tpu_custom_call.1} parent=27 // pred_check
          %p181 = pneg %p85
        $region38: #{tpu_custom_call.1} parent=27 // pred_check_branch
          %183 = sbr.rel (%p181) target = $region40
        $region39: #{tpu_custom_call.1} parent=27 // pred_region
          %s185 = ssub.s32 128, 128
          %186 = vsyncadd %s177, %s185
          %s187 = smul.addr %s20, 128
          %s188 = scalar_lea.hbm %s2, %s187
          %s190 = sshll.u32 %s180, 4
          %s191 = int_to_ptr.vmem [resolvable:$true] %s190
          %193 = dma.vmem_to_hbm [thread:$0]  %s191, 128, %s188, %s177
        $region40: #{tpu_custom_call.1} parent=27 // pred_fallthru
          _
      $region28: #{tpu_custom_call.1} parent=5 // pred_fallthru
        _
      %p194 = scmp.le.s32.totalorder 2, %s15
      // Predicated region
      $region41: #{tpu_custom_call.1} parent=5 // pred_check
        %p195 = pneg %p194
      $region42: #{tpu_custom_call.1} parent=5 // pred_check_branch
        %197 = sbr.rel (%p195) target = $region44
      $region43: #{tpu_custom_call.1} parent=5 // pred_region
        %s198 = ssub.s32 %s15, 2
        // Predicated region
        $region45: #{tpu_custom_call.1} parent=43 // pred_check
          %p199 = pneg %p91
        $region46: #{tpu_custom_call.1} parent=43 // pred_check_branch
          %201 = sbr.rel (%p199) target = $region48
        $region47: #{tpu_custom_call.1} parent=43 // pred_region
          %s202 = sand.u32 %s76, 1
          %s203 = scalar_lea.sflag [#allocation4], %s202
          %s204 = sand.u32 %s76, 1
          %s205 = smul.addr %s204, 8
          %s206 = scalar_lea.vmem [#allocation7], %s205
          %207 = dma.done %s203, 128
        $region48: #{tpu_custom_call.1} parent=43 // pred_fallthru
          _
      $region44: #{tpu_custom_call.1} parent=5 // pred_fallthru
        _
    $region6: #{tpu_custom_call.1} parent=1 // loop_footer
      %s19 = sadd.s32 1, %s15
    $region7: #{tpu_custom_call.1} parent=1 // loop_footer_branch
      %14 = sbr.rel target = $region3
    $region8: #{tpu_custom_call.1} parent=1 // loop_exit
      _
    %208 = vsyncpa [#allocation3], 1
    %s209 = scalar_lea.sflag [#allocation3], 1
    %210 = vsyncpa %s209, 1
    %211 = vsyncpa [#allocation6], 1
    %212 = vsyncpa [#allocation4], 1
    %s213 = scalar_lea.sflag [#allocation4], 1
    %214 = vsyncpa %s213, 1

// kernel: net_forward.1
$region0: #{net_forward.1}
  #allocation0 [shape = 'u32[]', space=smem, size = 0x4, offset = 0x4, fixed_abs, tag = 'smem constant byte address 0x4 - core index']
  #allocation1 [shape = 'u32[144,128]{1,0:T(1,128)}', space=vmem, size = 0x12000, scoped, tag = 'internal scratch']
  %s0 = inlined_call_operand.vmem [shape: bf16[512,32], index: 0, kind: input, shape index: {}]
  %s1 = inlined_call_operand.vmem [shape: bf16[416,128], index: 1, kind: input, shape index: {}]
  %s2 = inlined_call_operand.vmem [shape: f32[4,128], index: 2, kind: input, shape index: {}]
  %s3 = inlined_call_operand.hbm [shape: f32[4,1,128], index: 3, kind: output, shape index: {}]
  %s4 = sld [smem:[#allocation0]]
  $region45: #{net_forward.1} parent=0
    _
  %s6 = ssub.s32 1, %s4
  %s7 = scalar_select 0, %s6, %s4
  $region1: #{net_forward.1} parent=0
    #allocation2 [shape = 'u8[1024]{0}', space=vmem, size = 0x400, scoped, tag = 'output window, operand 0']
    #allocation3 [shape = 's32[2]{0}', space=sflag, size = 0x8, scoped, tag = 'scoped memory for net_forward.1']
    %8 = vsyncpa [#allocation3], 0
    %s9 = scalar_lea.sflag [#allocation3], 1
    %10 = vsyncpa %s9, 0
    loop: start=0, step=1, limit=6
    $region2: #{net_forward.1} parent=1 // loop_pre_header
      _
    $region3: #{net_forward.1} parent=1 // loop_header
      %s12 = sphi 0, %s16
      %p13 = scmp.ge.s32.totalorder %s12, 6
      %s22 = sphi 0, %s24
      %s25 = sphi 0, %s22
      %s26 = sphi 0, %s25
      %s42 = sphi 0, %s26
      %s46 = sphi 0, %s46
      %s48 = sphi 0, %s46
      %s49 = sphi 0, %s48
      %s63 = sphi 0, %s49
      %s67 = sphi 0, %s67
      %s69 = sphi 0, %s67
      %s70 = sphi 0, %s69
      %s84 = sphi 0, %s70
      %s90 = sphi 0, %s92
      %s93 = sphi 0, %s90
      %s94 = sphi 0, %s93
      %s110 = sphi 0, %s94
    $region4: #{net_forward.1} parent=1 // loop_header_branch
      %15 = sbr.rel (%p13) target = $region8
    $region5: #{net_forward.1} parent=1 // loop_body
      %s17 = ssub.s32 %s12, 1
      %s18 = ssub.s32 %s12, 2
      %s19 = sadd.s32 %s12, 1
      %s20 = ssub.s32 %s12, %s19
      %p21 = scmp.eq.s32.totalorder %s20, 0
      %s23 = sadd.s32 %s22, 1
      %s24 = scalar_select %p21, %s22, %s23
      %p27 = pneg %p21
      %p28 = scmp.eq.s32.totalorder %s12, 3
      %p29 = por %p27, %p28
      %p30 = scmp.ne.s32.totalorder %s22, %s25
      %p31 = scmp.eq.s32.totalorder %s12, 0
      %p32 = por %p30, %p31
      %p33 = scmp.ne.s32.totalorder %s22, %s25
      %p34 = scmp.eq.s32.totalorder %s17, 3
      %p35 = por %p33, %p34
      %p36 = scmp.ne.s32.totalorder %s25, %s26
      %p37 = scmp.eq.s32.totalorder %s17, 0
      %p38 = por %p36, %p37
      %p39 = scmp.ne.s32.totalorder %s25, %s26
      %p40 = scmp.eq.s32.totalorder %s18, 3
      %p41 = por %p39, %p40
      %p43 = scmp.ne.s32.totalorder %s26, %s42
      %p44 = scmp.eq.s32.totalorder %s18, 0
      %p45 = por %p43, %p44
      %s47 = sadd.s32 %s46, 1
      %p50 = scmp.eq.s32.totalorder %s12, 3
      %p51 = scmp.ne.s32.totalorder %s46, %s48
      %p52 = scmp.eq.s32.totalorder %s12, 0
      %p53 = por %p51, %p52
      %p54 = scmp.ne.s32.totalorder %s46, %s48
      %p55 = scmp.eq.s32.totalorder %s17, 3
      %p56 = por %p54, %p55
      %p57 = scmp.ne.s32.totalorder %s48, %s49
      %p58 = scmp.eq.s32.totalorder %s17, 0
      %p59 = por %p57, %p58
      %p60 = scmp.ne.s32.totalorder %s48, %s49
      %p61 = scmp.eq.s32.totalorder %s18, 3
      %p62 = por %p60, %p61
      %p64 = scmp.ne.s32.totalorder %s49, %s63
      %p65 = scmp.eq.s32.totalorder %s18, 0
      %p66 = por %p64, %p65
      %s68 = sadd.s32 %s67, 1
      %p71 = scmp.eq.s32.totalorder %s12, 3
      %p72 = scmp.ne.s32.totalorder %s67, %s69
      %p73 = scmp.eq.s32.totalorder %s12, 0
      %p74 = por %p72, %p73
      %p75 = scmp.ne.s32.totalorder %s67, %s69
      %p76 = scmp.eq.s32.totalorder %s17, 3
      %p77 = por %p75, %p76
      %p78 = scmp.ne.s32.totalorder %s69, %s70
      %p79 = scmp.eq.s32.totalorder %s17, 0
      %p80 = por %p78, %p79
      %p81 = scmp.ne.s32.totalorder %s69, %s70
      %p82 = scmp.eq.s32.totalorder %s18, 3
      %p83 = por %p81, %p82
      %p85 = scmp.ne.s32.totalorder %s70, %s84
      %p86 = scmp.eq.s32.totalorder %s18, 0
      %p87 = por %p85, %p86
      %s88 = ssub.s32 %s12, %s19
      %p89 = scmp.eq.s32.totalorder %s88, 0
      %s91 = sadd.s32 %s90, 1
      %s92 = scalar_select %p89, %s90, %s91
      %p95 = pneg %p89
      %p96 = scmp.eq.s32.totalorder %s12, 3
      %p97 = por %p95, %p96
      %p98 = scmp.ne.s32.totalorder %s90, %s93
      %p99 = scmp.eq.s32.totalorder %s12, 0
      %p100 = por %p98, %p99
      %p101 = scmp.ne.s32.totalorder %s90, %s93
      %p102 = scmp.eq.s32.totalorder %s17, 3
      %p103 = por %p101, %p102
      %p104 = scmp.ne.s32.totalorder %s93, %s94
      %p105 = scmp.eq.s32.totalorder %s17, 0
      %p106 = por %p104, %p105
      %p107 = scmp.ne.s32.totalorder %s93, %s94
      %p108 = scmp.eq.s32.totalorder %s18, 3
      %p109 = por %p107, %p108
      %p111 = scmp.ne.s32.totalorder %s94, %s110
      %p112 = scmp.eq.s32.totalorder %s18, 0
      %p113 = por %p111, %p112
      %p114 = scmp.le.s32.totalorder 1, %s12
      %p115 = scmp.lt.s32.totalorder %s12, 5
      %p116 = pnand %p114, %p115
      %p117 = pneg %p116
      // Predicated region
      $region9: #{net_forward.1} parent=5 // pred_check
        _
      $region10: #{net_forward.1} parent=5 // pred_check_branch
        %119 = sbr.rel (%p116) target = $region12
      $region11: #{net_forward.1} parent=5 // pred_region
        %s120 = ssub.s32 %s12, 1
        // Predicated region
        $region13: #{net_forward.1} parent=11 // pred_check
          %p121 = pneg %p59
        $region14: #{net_forward.1} parent=11 // pred_check_branch
          %123 = sbr.rel (%p121) target = $region16
        $region15: #{net_forward.1} parent=11 // pred_region
          _
        $region16: #{net_forward.1} parent=11 // pred_fallthru
          _
        // Predicated region
        $region17: #{net_forward.1} parent=11 // pred_check
          %p124 = pneg %p80
        $region18: #{net_forward.1} parent=11 // pred_check_branch
          %126 = sbr.rel (%p124) target = $region20
        $region19: #{net_forward.1} parent=11 // pred_region
          _
        $region20: #{net_forward.1} parent=11 // pred_fallthru
          _
      $region12: #{net_forward.1} parent=5 // pred_fallthru
        _
      %p127 = scmp.lt.s32.totalorder %s12, 4
      // Predicated region
      $region21: #{net_forward.1} parent=5 // pred_check
        %p128 = pneg %p127
      $region22: #{net_forward.1} parent=5 // pred_check_branch
        %130 = sbr.rel (%p128) target = $region24
      $region23: #{net_forward.1} parent=5 // pred_region
        // Predicated region
        $region25: #{net_forward.1} parent=23 // pred_check
          %p131 = pneg %p32
        $region26: #{net_forward.1} parent=23 // pred_check_branch
          %133 = sbr.rel (%p131) target = $region28
        $region27: #{net_forward.1} parent=23 // pred_region
          %s134 = smul.u32 16, %s12
          %p135 = scmp.lt.s32.totalorder %s134, 63
          %s136 = scalar_select %p135, %s134, 63
          %s137 = smul.addr %s136, 4
          %s138 = scalar_lea.vmem %s0, %s137
          %s139 = smul.u32 16, %s12
        $region28: #{net_forward.1} parent=23 // pred_fallthru
          _
      $region24: #{net_forward.1} parent=5 // pred_fallthru
        _
      %p140 = scmp.le.s32.totalorder 1, %s12
      %p141 = scmp.lt.s32.totalorder %s12, 5
      %p142 = pnand %p140, %p141
      %p143 = pneg %p142
      // Predicated region
      $region29: #{net_forward.1} parent=5 // pred_check
        _
      $region30: #{net_forward.1} parent=5 // pred_check_branch
        %145 = sbr.rel (%p142) target = $region32
      $region31: #{net_forward.1} parent=5 // pred_region
        %s146 = ssub.s32 %s12, 1
        %s147 = smul.u32 16, %s17
        %p148 = scmp.lt.s32.totalorder %s147, 63
        %s149 = scalar_select %p148, %s147, 63
        %s150 = smul.addr %s149, 4
        %s151 = scalar_lea.vmem %s0, %s150
        %p152 = pneg %p38
        %p153 = pneg %p35
        %p154 = pneg %p59
        %p155 = pneg %p56
        %p156 = pneg %p80
        %p157 = pneg %p77
        %p158 = pneg %p106
        %p159 = pneg %p103
        %s160 = sand.u32 %s93, 1
        %s161 = scalar_lea.sflag [#allocation3], %s160
        %s162 = sand.u32 %s93, 1
        %s163 = scalar_lea.vmem [#allocation2], %s162
        %s164 = smul.u32 16, %s17
        %p165 = scmp.lt.s32.totalorder %s164, 63
        %s166 = scalar_select %p165, %s164, 63
        %s167 = smul.addr %s166, 4
        %s168 = scalar_lea.vmem %s0, %s167
        %s169 = smul.u32 16, %s17
        %v171 = vld [vmem:[%s168] sm:$0xf]
        %v172 = vld [vmem:[%s168 + $0x4] sm:$0xf]
        %v173 = vld [vmem:[%s168 + $0x8] sm:$0xf]
        %v174 = vld [vmem:[%s168 + $0xc] sm:$0xf]
        %v175 = vld [vmem:[%s168 + $0x10] sm:$0xf]
        %v176 = vld [vmem:[%s168 + $0x14] sm:$0xf]
        %v177 = vld [vmem:[%s168 + $0x18] sm:$0xf]
        %v178 = vld [vmem:[%s168 + $0x1c] sm:$0xf]
        %v179 = vld [vmem:[%s168 + $0x20] sm:$0xf]
        %v180 = vld [vmem:[%s168 + $0x24] sm:$0xf]
        %v181 = vld [vmem:[%s168 + $0x28] sm:$0xf]
        %v182 = vld [vmem:[%s168 + $0x2c] sm:$0xf]
        %v183 = vld [vmem:[%s168 + $0x30] sm:$0xf]
        %v184 = vld [vmem:[%s168 + $0x34] sm:$0xf]
        %v185 = vld [vmem:[%s168 + $0x38] sm:$0xf]
        %v186 = vld [vmem:[%s168 + $0x3c] sm:$0xf]
        %v187 = vld [vmem:[%s1] sm:$0xf]
        %v188 = vld [vmem:[%s1 + $0x4] sm:$0xf]
        %v189 = vld [vmem:[%s1 + $0x8] sm:$0xf]
        %v190 = vld [vmem:[%s1 + $0xc] sm:$0xf]
        %v191 = vld [vmem:[%s2] sm:$0x1]
        %v192 = vlaneseq
        %v193 = vshrl.u32 %v192, 7
        %v194 = vsub.s32 0, %v193
        %v195 = vrot.slane %v191, %v194
        %v212 = vunpack.c.l.b16 %v171
        %v213 = vunpack.c.l.b16 %v172
        %v214 = vunpack.c.l.b16 %v173
        %v215 = vunpack.c.l.b16 %v174
        %v216 = vunpack.c.l.b16 %v175
        %v217 = vunpack.c.l.b16 %v176
        %v218 = vunpack.c.l.b16 %v177
        %v219 = vunpack.c.l.b16 %v178
        %v220 = vunpack.c.l.b16 %v179
        %v221 = vunpack.c.l.b16 %v180
        %v222 = vunpack.c.l.b16 %v181
        %v223 = vunpack.c.l.b16 %v182
        %v224 = vunpack.c.l.b16 %v183
        %v225 = vunpack.c.l.b16 %v184
        %v226 = vunpack.c.l.b16 %v185
        %v227 = vunpack.c.l.b16 %v186
        %v228 = vpack.c.b16 %v213, %v212
        %v229 = vpack.c.b16 %v215, %v214
        %v230 = vpack.c.b16 %v217, %v216
        %v231 = vpack.c.b16 %v219, %v218
        %v232 = vpack.c.b16 %v221, %v220
        %v233 = vpack.c.b16 %v223, %v222
        %v234 = vpack.c.b16 %v225, %v224
        %v235 = vpack.c.b16 %v227, %v226
        %v240 = vunpack.c.l.b16 %v187
        %v241 = vunpack.c.l.b16 %v188
        %v242 = vunpack.c.l.b16 %v189
        %v243 = vunpack.c.l.b16 %v190
        %v244 = vpack.c.b16 %v241, %v240
        %v245 = vpack.c.b16 %v243, %v242
        %vm248 = vcmask 261120
        %v250 = vsel %vm248, %v228, 0
        %v253 = vsel %vm248, %v229, 0
        %v256 = vsel %vm248, %v230, 0
        %v259 = vsel %vm248, %v231, 0
        %v262 = vsel %vm248, %v232, 0
        %v265 = vsel %vm248, %v233, 0
        %v268 = vsel %vm248, %v234, 0
        %v271 = vsel %vm248, %v235, 0
        %273 = vmatprep.subr.bf16.mxu0 0
        %274 = vmatpush1.bf16.msra.mxu0 %v244
        %275 = vmatprep.subr.bf16.mxu0 0
        %276 = vmatpush1.bf16.msra.mxu0 %v245
        %277 = vmatprep.subr.bf16.mxu0 0
        %278 = vmatpush1.bf16.msra.mxu0 0
        %279 = vmatprep.subr.bf16.mxu0 0
        %280 = vmatpush1.bf16.msra.mxu0 0
        %281 = vmatprep.subr.bf16.mxu0 0
        %282 = vmatpush1.bf16.msra.mxu0 0
        %283 = vmatprep.subr.bf16.mxu0 0
        %284 = vmatpush1.bf16.msra.mxu0 0
        %285 = vmatprep.subr.bf16.mxu0 0
        %286 = vmatpush1.bf16.msra.mxu0 0
        %287 = vmatprep.subr.bf16.mxu0 0
        %288 = vmatpush1.bf16.msra.mxu0 0
        %289 = vmatprep.subr.bf16.mxu0 0
        %290 = vmatpush1.bf16.msra.mxu0 0
        %291 = vmatprep.subr.bf16.mxu0 0
        %292 = vmatpush1.bf16.msra.mxu0 0
        %293 = vmatprep.subr.bf16.mxu0 0
        %294 = vmatpush1.bf16.msra.mxu0 0
        %295 = vmatprep.subr.bf16.mxu0 0
        %296 = vmatpush1.bf16.msra.mxu0 0
        %297 = vmatprep.subr.bf16.mxu0 0
        %298 = vmatpush1.bf16.msra.mxu0 0
        %299 = vmatprep.subr.bf16.mxu0 0
        %300 = vmatpush1.bf16.msra.mxu0 0
        %301 = vmatprep.subr.bf16.mxu0 0
        %302 = vmatpush1.bf16.msra.mxu0 0
        %303 = vmatprep.subr.bf16.mxu0 0
        %304 = vmatpush1.bf16.msra.mxu0 0
        %305 = vmatprep.mubr.bf16.mxu0 0
        %306 = vmatmul.mubr.bf16.gmra.mrb[0].mxu0 %v250
        %v307 = vpop.f32.mrb[0].mxu0
        %v308 = vadd.f32 %v195, %v307
        %v309 = vpop.f32.mrb[0].mxu0
        %v310 = vpop.f32.mrb[0].mxu0
        %v311 = vadd.f32 %v195, %v310
        %v312 = vpop.f32.mrb[0].mxu0
        %313 = vmatprep.mubr.bf16.mxu0 0
        %314 = vmatmul.mubr.bf16.gmra.mrb[0].mxu0 %v253
        %v315 = vpop.f32.mrb[0].mxu0
        %v316 = vadd.f32 %v195, %v315
        %v317 = vpop.f32.mrb[0].mxu0
        %v318 = vpop.f32.mrb[0].mxu0
        %v319 = vadd.f32 %v195, %v318
        %v320 = vpop.f32.mrb[0].mxu0
        %321 = vmatprep.mubr.bf16.mxu0 0
        %322 = vmatmul.mubr.bf16.gmra.mrb[0].mxu0 %v256
        %v323 = vpop.f32.mrb[0].mxu0
        %v324 = vadd.f32 %v195, %v323
        %v325 = vpop.f32.mrb[0].mxu0
        %v326 = vpop.f32.mrb[0].mxu0
        %v327 = vadd.f32 %v195, %v326
        %v328 = vpop.f32.mrb[0].mxu0
        %329 = vmatprep.mubr.bf16.mxu0 0
        %330 = vmatmul.mubr.bf16.gmra.mrb[0].mxu0 %v259
        %v331 = vpop.f32.mrb[0].mxu0
        %v332 = vadd.f32 %v195, %v331
        %v333 = vpop.f32.mrb[0].mxu0
        %v334 = vpop.f32.mrb[0].mxu0
        %v335 = vadd.f32 %v195, %v334
        %v336 = vpop.f32.mrb[0].mxu0
        %337 = vmatprep.mubr.bf16.mxu0 0
        %338 = vmatmul.mubr.bf16.gmra.mrb[0].mxu0 %v262
        %v339 = vpop.f32.mrb[0].mxu0
        %v340 = vadd.f32 %v195, %v339
        %v341 = vpop.f32.mrb[0].mxu0
        %v342 = vpop.f32.mrb[0].mxu0
        %v343 = vadd.f32 %v195, %v342
        %v344 = vpop.f32.mrb[0].mxu0
        %345 = vmatprep.mubr.bf16.mxu0 0
        %346 = vmatmul.mubr.bf16.gmra.mrb[0].mxu0 %v265
        %v347 = vpop.f32.mrb[0].mxu0
        %v348 = vadd.f32 %v195, %v347
        %v349 = vpop.f32.mrb[0].mxu0
        %v350 = vpop.f32.mrb[0].mxu0
        %v351 = vadd.f32 %v195, %v350
        %v352 = vpop.f32.mrb[0].mxu0
        %353 = vmatprep.mubr.bf16.mxu0 0
        %354 = vmatmul.mubr.bf16.gmra.mrb[0].mxu0 %v268
        %v355 = vpop.f32.mrb[0].mxu0
        %v356 = vadd.f32 %v195, %v355
        %v357 = vpop.f32.mrb[0].mxu0
        %v358 = vpop.f32.mrb[0].mxu0
        %v359 = vadd.f32 %v195, %v358
        %v360 = vpop.f32.mrb[0].mxu0
        %361 = vmatprep.mubr.bf16.mxu0 0
        %362 = vmatmul.mubr.bf16.gmra.mrb[0].mxu0 %v271
        %v363 = vpop.f32.mrb[0].mxu0
        %v364 = vadd.f32 %v195, %v363
        %v365 = vpop.f32.mrb[0].mxu0
        %v366 = vpop.f32.mrb[0].mxu0
        %v367 = vadd.f32 %v195, %v366
        %v368 = vpop.f32.mrb[0].mxu0
        %369 = vdwg.mxu0
        %v370 = vmax.f32 %v308, 0.0
        %v371 = vmax.f32 %v311, 0.0
        %v372 = vmax.f32 %v316, 0.0
        %v373 = vmax.f32 %v319, 0.0
        %v374 = vmax.f32 %v324, 0.0
        %v375 = vmax.f32 %v327, 0.0
        %v376 = vmax.f32 %v332, 0.0
        %v377 = vmax.f32 %v335, 0.0
        %v378 = vmax.f32 %v340, 0.0
        %v379 = vmax.f32 %v343, 0.0
        %v380 = vmax.f32 %v348, 0.0
        %v381 = vmax.f32 %v351, 0.0
        %v382 = vmax.f32 %v356, 0.0
        %v383 = vmax.f32 %v359, 0.0
        %v384 = vmax.f32 %v364, 0.0
        %v385 = vmax.f32 %v367, 0.0
        %v386 = vpack.c.bf16 %v371, %v370
        %v387 = vpack.c.bf16 %v373, %v372
        %v388 = vpack.c.bf16 %v375, %v374
        %v389 = vpack.c.bf16 %v377, %v376
        %v390 = vpack.c.bf16 %v379, %v378
        %v391 = vpack.c.bf16 %v381, %v380
        %v392 = vpack.c.bf16 %v383, %v382
        %v393 = vpack.c.bf16 %v385, %v384
        %v394 = vld [vmem:[%s1 + $0x10] sm:$0xf]
        %v395 = vld [vmem:[%s1 + $0x14] sm:$0xf]
        %v396 = vld [vmem:[%s1 + $0x18] sm:$0xf]
        %v397 = vld [vmem:[%s1 + $0x1c] sm:$0xf]
        %v398 = vld [vmem:[%s1 + $0x20] sm:$0xf]
        %v399 = vld [vmem:[%s1 + $0x24] sm:$0xf]
        %v400 = vld [vmem:[%s1 + $0x28] sm:$0xf]
        %v401 = vld [vmem:[%s1 + $0x2c] sm:$0xf]
        %v402 = vld [vmem:[%s1 + $0x30] sm:$0xf]
        %v403 = vld [vmem:[%s1 + $0x34] sm:$0xf]
        %v404 = vld [vmem:[%s1 + $0x38] sm:$0xf]
        %v405 = vld [vmem:[%s1 + $0x3c] sm:$0xf]
        %v406 = vld [vmem:[%s1 + $0x40] sm:$0xf]
        %v407 = vld [vmem:[%s1 + $0x44] sm:$0xf]
        %v408 = vld [vmem:[%s1 + $0x48] sm:$0xf]
        %v409 = vld [vmem:[%s1 + $0x4c] sm:$0xf]
        %v410 = vld [vmem:[%s2 + $0x1] sm:$0x1]
        %v411 = vlaneseq
        %v412 = vshrl.u32 %v411, 7
        %v413 = vsub.s32 0, %v412
        %v414 = vrot.slane %v410, %v413
        %v431 = vunpack.c.l.b16 %v394
        %v432 = vunpack.c.l.b16 %v395
        %v433 = vunpack.c.l.b16 %v396
        %v434 = vunpack.c.l.b16 %v397
        %v435 = vunpack.c.l.b16 %v398
        %v436 = vunpack.c.l.b16 %v399
        %v437 = vunpack.c.l.b16 %v400
        %v438 = vunpack.c.l.b16 %v401
        %v439 = vunpack.c.l.b16 %v402
        %v440 = vunpack.c.l.b16 %v403
        %v441 = vunpack.c.l.b16 %v404
        %v442 = vunpack.c.l.b16 %v405
        %v443 = vunpack.c.l.b16 %v406
        %v444 = vunpack.c.l.b16 %v407
        %v445 = vunpack.c.l.b16 %v408
        %v446 = vunpack.c.l.b16 %v409
        %v447 = vpack.c.b16 %v432, %v431
        %v448 = vpack.c.b16 %v434, %v433
        %v449 = vpack.c.b16 %v436, %v435
        %v450 = vpack.c.b16 %v438, %v437
        %v451 = vpack.c.b16 %v440, %v439
        %v452 = vpack.c.b16 %v442, %v441
        %v453 = vpack.c.b16 %v444, %v443
        %v454 = vpack.c.b16 %v446, %v445
        %463 = vmatprep.subr.bf16.mxu0 0
        %464 = vmatpush1.bf16.msra.mxu0 %v447
        %465 = vmatprep.subr.bf16.mxu0 0
        %466 = vmatpush1.bf16.msra.mxu0 %v448
        %467 = vmatprep.subr.bf16.mxu0 0
        %468 = vmatpush1.bf16.msra.mxu0 %v449
        %469 = vmatprep.subr.bf16.mxu0 0
        %470 = vmatpush1.bf16.msra.mxu0 %v450
        %471 = vmatprep.subr.bf16.mxu0 0
        %472 = vmatpush1.bf16.msra.mxu0 %v451
        %473 = vmatprep.subr.bf16.mxu0 0
        %474 = vmatpush1.bf16.msra.mxu0 %v452
        %475 = vmatprep.subr.bf16.mxu0 0
        %476 = vmatpush1.bf16.msra.mxu0 %v453
        %477 = vmatprep.subr.bf16.mxu0 0
        %478 = vmatpush1.bf16.msra.mxu0 %v454
        %479 = vmatprep.subr.bf16.mxu0 0
        %480 = vmatpush1.bf16.msra.mxu0 0
        %481 = vmatprep.subr.bf16.mxu0 0
        %482 = vmatpush1.bf16.msra.mxu0 0
        %483 = vmatprep.subr.bf16.mxu0 0
        %484 = vmatpush1.bf16.msra.mxu0 0
        %485 = vmatprep.subr.bf16.mxu0 0
        %486 = vmatpush1.bf16.msra.mxu0 0
        %487 = vmatprep.subr.bf16.mxu0 0
        %488 = vmatpush1.bf16.msra.mxu0 0
        %489 = vmatprep.subr.bf16.mxu0 0
        %490 = vmatpush1.bf16.msra.mxu0 0
        %491 = vmatprep.subr.bf16.mxu0 0
        %492 = vmatpush1.bf16.msra.mxu0 0
        %493 = vmatprep.subr.bf16.mxu0 0
        %494 = vmatpush1.bf16.msra.mxu0 0
        %495 = vmatprep.mubr.bf16.mxu0 0
        %496 = vmatmul.mubr.bf16.gmra.mrb[0].mxu0 %v386
        %v497 = vpop.f32.mrb[0].mxu0
        %v498 = vadd.f32 %v414, %v497
        %v499 = vpop.f32.mrb[0].mxu0
        %v500 = vpop.f32.mrb[0].mxu0
        %v501 = vadd.f32 %v414, %v500
        %v502 = vpop.f32.mrb[0].mxu0
        %503 = vmatprep.mubr.bf16.mxu0 0
        %504 = vmatmul.mubr.bf16.gmra.mrb[0].mxu0 %v387
        %v505 = vpop.f32.mrb[0].mxu0
        %v506 = vadd.f32 %v414, %v505
        %v507 = vpop.f32.mrb[0].mxu0
        %v508 = vpop.f32.mrb[0].mxu0
        %v509 = vadd.f32 %v414, %v508
        %v510 = vpop.f32.mrb[0].mxu0
        %511 = vmatprep.mubr.bf16.mxu0 0
        %512 = vmatmul.mubr.bf16.gmra.mrb[0].mxu0 %v388
        %v513 = vpop.f32.mrb[0].mxu0
        %v514 = vadd.f32 %v414, %v513
        %v515 = vpop.f32.mrb[0].mxu0
        %v516 = vpop.f32.mrb[0].mxu0
        %v517 = vadd.f32 %v414, %v516
        %v518 = vpop.f32.mrb[0].mxu0
        %519 = vmatprep.mubr.bf16.mxu0 0
        %520 = vmatmul.mubr.bf16.gmra.mrb[0].mxu0 %v389
        %v521 = vpop.f32.mrb[0].mxu0
        %v522 = vadd.f32 %v414, %v521
        %v523 = vpop.f32.mrb[0].mxu0
        %v524 = vpop.f32.mrb[0].mxu0
        %v525 = vadd.f32 %v414, %v524
        %v526 = vpop.f32.mrb[0].mxu0
        %527 = vmatprep.mubr.bf16.mxu0 0
        %528 = vmatmul.mubr.bf16.gmra.mrb[0].mxu0 %v390
        %v529 = vpop.f32.mrb[0].mxu0
        %v530 = vadd.f32 %v414, %v529
        %v531 = vpop.f32.mrb[0].mxu0
        %v532 = vpop.f32.mrb[0].mxu0
        %v533 = vadd.f32 %v414, %v532
        %v534 = vpop.f32.mrb[0].mxu0
        %535 = vmatprep.mubr.bf16.mxu0 0
        %536 = vmatmul.mubr.bf16.gmra.mrb[0].mxu0 %v391
        %v537 = vpop.f32.mrb[0].mxu0
        %v538 = vadd.f32 %v414, %v537
        %v539 = vpop.f32.mrb[0].mxu0
        %v540 = vpop.f32.mrb[0].mxu0
        %v541 = vadd.f32 %v414, %v540
        %v542 = vpop.f32.mrb[0].mxu0
        %543 = vmatprep.mubr.bf16.mxu0 0
        %544 = vmatmul.mubr.bf16.gmra.mrb[0].mxu0 %v392
        %v545 = vpop.f32.mrb[0].mxu0
        %v546 = vadd.f32 %v414, %v545
        %v547 = vpop.f32.mrb[0].mxu0
        %v548 = vpop.f32.mrb[0].mxu0
        %v549 = vadd.f32 %v414, %v548
        %v550 = vpop.f32.mrb[0].mxu0
        %551 = vmatprep.mubr.bf16.mxu0 0
        %552 = vmatmul.mubr.bf16.gmra.mrb[0].mxu0 %v393
        %v553 = vpop.f32.mrb[0].mxu0
        %v554 = vadd.f32 %v414, %v553
        %v555 = vpop.f32.mrb[0].mxu0
        %v556 = vpop.f32.mrb[0].mxu0
        %v557 = vadd.f32 %v414, %v556
        %v558 = vpop.f32.mrb[0].mxu0
        %559 = vdwg.mxu0
        %v560 = vmax.f32 %v498, 0.0
        %v561 = vmax.f32 %v501, 0.0
        %v562 = vmax.f32 %v506, 0.0
        %v563 = vmax.f32 %v509, 0.0
        %v564 = vmax.f32 %v514, 0.0
        %v565 = vmax.f32 %v517, 0.0
        %v566 = vmax.f32 %v522, 0.0
        %v567 = vmax.f32 %v525, 0.0
        %v568 = vmax.f32 %v530, 0.0
        %v569 = vmax.f32 %v533, 0.0
        %v570 = vmax.f32 %v538, 0.0
        %v571 = vmax.f32 %v541, 0.0
        %v572 = vmax.f32 %v546, 0.0
        %v573 = vmax.f32 %v549, 0.0
        %v574 = vmax.f32 %v554, 0.0
        %v575 = vmax.f32 %v557, 0.0
        %v576 = vpack.c.bf16 %v561, %v560
        %v577 = vpack.c.bf16 %v563, %v562
        %v578 = vpack.c.bf16 %v565, %v564
        %v579 = vpack.c.bf16 %v567, %v566
        %v580 = vpack.c.bf16 %v569, %v568
        %v581 = vpack.c.bf16 %v571, %v570
        %v582 = vpack.c.bf16 %v573, %v572
        %v583 = vpack.c.bf16 %v575, %v574
        %v584 = vld [vmem:[%s1 + $0x50] sm:$0xf]
        %v585 = vld [vmem:[%s1 + $0x54] sm:$0xf]
        %v586 = vld [vmem:[%s1 + $0x58] sm:$0xf]
        %v587 = vld [vmem:[%s1 + $0x5c] sm:$0xf]
        %v588 = vld [vmem:[%s1 + $0x60] sm:$0xf]
        %v589 = vld [vmem:[%s1 + $0x64] sm:$0xf]
        %v590 = vld [vmem:[%s1 + $0x68] sm:$0xf]
        %v591 = vld [vmem:[%s1 + $0x6c] sm:$0xf]
        %v592 = vld [vmem:[%s1 + $0x70] sm:$0xf]
        %v593 = vld [vmem:[%s1 + $0x74] sm:$0xf]
        %v594 = vld [vmem:[%s1 + $0x78] sm:$0xf]
        %v595 = vld [vmem:[%s1 + $0x7c] sm:$0xf]
        %v596 = vld [vmem:[%s1 + $0x80] sm:$0xf]
        %v597 = vld [vmem:[%s1 + $0x84] sm:$0xf]
        %v598 = vld [vmem:[%s1 + $0x88] sm:$0xf]
        %v599 = vld [vmem:[%s1 + $0x8c] sm:$0xf]
        %v600 = vld [vmem:[%s2 + $0x2] sm:$0x1]
        %v601 = vlaneseq
        %v602 = vshrl.u32 %v601, 7
        %v603 = vsub.s32 0, %v602
        %v604 = vrot.slane %v600, %v603
        %v621 = vunpack.c.l.b16 %v584
        %v622 = vunpack.c.l.b16 %v585
        %v623 = vunpack.c.l.b16 %v586
        %v624 = vunpack.c.l.b16 %v587
        %v625 = vunpack.c.l.b16 %v588
        %v626 = vunpack.c.l.b16 %v589
        %v627 = vunpack.c.l.b16 %v590
        %v628 = vunpack.c.l.b16 %v591
        %v629 = vunpack.c.l.b16 %v592
        %v630 = vunpack.c.l.b16 %v593
        %v631 = vunpack.c.l.b16 %v594
        %v632 = vunpack.c.l.b16 %v595
        %v633 = vunpack.c.l.b16 %v596
        %v634 = vunpack.c.l.b16 %v597
        %v635 = vunpack.c.l.b16 %v598
        %v636 = vunpack.c.l.b16 %v599
        %v637 = vpack.c.b16 %v622, %v621
        %v638 = vpack.c.b16 %v624, %v623
        %v639 = vpack.c.b16 %v626, %v625
        %v640 = vpack.c.b16 %v628, %v627
        %v641 = vpack.c.b16 %v630, %v629
        %v642 = vpack.c.b16 %v632, %v631
        %v643 = vpack.c.b16 %v634, %v633
        %v644 = vpack.c.b16 %v636, %v635
        %653 = vmatprep.subr.bf16.mxu0 0
        %654 = vmatpush1.bf16.msra.mxu0 %v637
        %655 = vmatprep.subr.bf16.mxu0 0
        %656 = vmatpush1.bf16.msra.mxu0 %v638
        %657 = vmatprep.subr.bf16.mxu0 0
        %658 = vmatpush1.bf16.msra.mxu0 %v639
        %659 = vmatprep.subr.bf16.mxu0 0
        %660 = vmatpush1.bf16.msra.mxu0 %v640
        %661 = vmatprep.subr.bf16.mxu0 0
        %662 = vmatpush1.bf16.msra.mxu0 %v641
        %663 = vmatprep.subr.bf16.mxu0 0
        %664 = vmatpush1.bf16.msra.mxu0 %v642
        %665 = vmatprep.subr.bf16.mxu0 0
        %666 = vmatpush1.bf16.msra.mxu0 %v643
        %667 = vmatprep.subr.bf16.mxu0 0
        %668 = vmatpush1.bf16.msra.mxu0 %v644
        %669 = vmatprep.subr.bf16.mxu0 0
        %670 = vmatpush1.bf16.msra.mxu0 0
        %671 = vmatprep.subr.bf16.mxu0 0
        %672 = vmatpush1.bf16.msra.mxu0 0
        %673 = vmatprep.subr.bf16.mxu0 0
        %674 = vmatpush1.bf16.msra.mxu0 0
        %675 = vmatprep.subr.bf16.mxu0 0
        %676 = vmatpush1.bf16.msra.mxu0 0
        %677 = vmatprep.subr.bf16.mxu0 0
        %678 = vmatpush1.bf16.msra.mxu0 0
        %679 = vmatprep.subr.bf16.mxu0 0
        %680 = vmatpush1.bf16.msra.mxu0 0
        %681 = vmatprep.subr.bf16.mxu0 0
        %682 = vmatpush1.bf16.msra.mxu0 0
        %683 = vmatprep.subr.bf16.mxu0 0
        %684 = vmatpush1.bf16.msra.mxu0 0
        %685 = vmatprep.mubr.bf16.mxu0 0
        %686 = vmatmul.mubr.bf16.gmra.mrb[0].mxu0 %v576
        %v687 = vpop.f32.mrb[0].mxu0
        %v688 = vadd.f32 %v604, %v687
        %v689 = vpop.f32.mrb[0].mxu0
        %v690 = vpop.f32.mrb[0].mxu0
        %v691 = vadd.f32 %v604, %v690
        %v692 = vpop.f32.mrb[0].mxu0
        %693 = vmatprep.mubr.bf16.mxu0 0
        %694 = vmatmul.mubr.bf16.gmra.mrb[0].mxu0 %v577
        %v695 = vpop.f32.mrb[0].mxu0
        %v696 = vadd.f32 %v604, %v695
        %v697 = vpop.f32.mrb[0].mxu0
        %v698 = vpop.f32.mrb[0].mxu0
        %v699 = vadd.f32 %v604, %v698
        %v700 = vpop.f32.mrb[0].mxu0
        %701 = vmatprep.mubr.bf16.mxu0 0
        %702 = vmatmul.mubr.bf16.gmra.mrb[0].mxu0 %v578
        %v703 = vpop.f32.mrb[0].mxu0
        %v704 = vadd.f32 %v604, %v703
        %v705 = vpop.f32.mrb[0].mxu0
        %v706 = vpop.f32.mrb[0].mxu0
        %v707 = vadd.f32 %v604, %v706
        %v708 = vpop.f32.mrb[0].mxu0
        %709 = vmatprep.mubr.bf16.mxu0 0
        %710 = vmatmul.mubr.bf16.gmra.mrb[0].mxu0 %v579
        %v711 = vpop.f32.mrb[0].mxu0
        %v712 = vadd.f32 %v604, %v711
        %v713 = vpop.f32.mrb[0].mxu0
        %v714 = vpop.f32.mrb[0].mxu0
        %v715 = vadd.f32 %v604, %v714
        %v716 = vpop.f32.mrb[0].mxu0
        %717 = vmatprep.mubr.bf16.mxu0 0
        %718 = vmatmul.mubr.bf16.gmra.mrb[0].mxu0 %v580
        %v719 = vpop.f32.mrb[0].mxu0
        %v720 = vadd.f32 %v604, %v719
        %v721 = vpop.f32.mrb[0].mxu0
        %v722 = vpop.f32.mrb[0].mxu0
        %v723 = vadd.f32 %v604, %v722
        %v724 = vpop.f32.mrb[0].mxu0
        %725 = vmatprep.mubr.bf16.mxu0 0
        %726 = vmatmul.mubr.bf16.gmra.mrb[0].mxu0 %v581
        %v727 = vpop.f32.mrb[0].mxu0
        %v728 = vadd.f32 %v604, %v727
        %v729 = vpop.f32.mrb[0].mxu0
        %v730 = vpop.f32.mrb[0].mxu0
        %v731 = vadd.f32 %v604, %v730
        %v732 = vpop.f32.mrb[0].mxu0
        %733 = vmatprep.mubr.bf16.mxu0 0
        %734 = vmatmul.mubr.bf16.gmra.mrb[0].mxu0 %v582
        %v735 = vpop.f32.mrb[0].mxu0
        %v736 = vadd.f32 %v604, %v735
        %v737 = vpop.f32.mrb[0].mxu0
        %v738 = vpop.f32.mrb[0].mxu0
        %v739 = vadd.f32 %v604, %v738
        %v740 = vpop.f32.mrb[0].mxu0
        %741 = vmatprep.mubr.bf16.mxu0 0
        %742 = vmatmul.mubr.bf16.gmra.mrb[0].mxu0 %v583
        %v743 = vpop.f32.mrb[0].mxu0
        %v744 = vadd.f32 %v604, %v743
        %v745 = vpop.f32.mrb[0].mxu0
        %v746 = vpop.f32.mrb[0].mxu0
        %v747 = vadd.f32 %v604, %v746
        %v748 = vpop.f32.mrb[0].mxu0
        %749 = vdwg.mxu0
        %v750 = vmax.f32 %v688, 0.0
        %v751 = vmax.f32 %v691, 0.0
        %v752 = vmax.f32 %v696, 0.0
        %v753 = vmax.f32 %v699, 0.0
        %v754 = vmax.f32 %v704, 0.0
        %v755 = vmax.f32 %v707, 0.0
        %v756 = vmax.f32 %v712, 0.0
        %v757 = vmax.f32 %v715, 0.0
        %v758 = vmax.f32 %v720, 0.0
        %v759 = vmax.f32 %v723, 0.0
        %v760 = vmax.f32 %v728, 0.0
        %v761 = vmax.f32 %v731, 0.0
        %v762 = vmax.f32 %v736, 0.0
        %v763 = vmax.f32 %v739, 0.0
        %v764 = vmax.f32 %v744, 0.0
        %v765 = vmax.f32 %v747, 0.0
        %v766 = vpack.c.bf16 %v751, %v750
        %v767 = vpack.c.bf16 %v753, %v752
        %v768 = vpack.c.bf16 %v755, %v754
        %v769 = vpack.c.bf16 %v757, %v756
        %v770 = vpack.c.bf16 %v759, %v758
        %v771 = vpack.c.bf16 %v761, %v760
        %v772 = vpack.c.bf16 %v763, %v762
        %v773 = vpack.c.bf16 %v765, %v764
        %v774 = vld [vmem:[%s1 + $0x90] sm:$0xf]
        %v775 = vld [vmem:[%s1 + $0x94] sm:$0xf]
        %v776 = vld [vmem:[%s1 + $0x98] sm:$0xf]
        %v777 = vld [vmem:[%s1 + $0x9c] sm:$0xf]
        %v778 = vld [vmem:[%s1 + $0xa0] sm:$0xf]
        %v779 = vld [vmem:[%s1 + $0xa4] sm:$0xf]
        %v780 = vld [vmem:[%s1 + $0xa8] sm:$0xf]
        %v781 = vld [vmem:[%s1 + $0xac] sm:$0xf]
        %v782 = vld [vmem:[%s1 + $0xb0] sm:$0xf]
        %v783 = vld [vmem:[%s1 + $0xb4] sm:$0xf]
        %v784 = vld [vmem:[%s1 + $0xb8] sm:$0xf]
        %v785 = vld [vmem:[%s1 + $0xbc] sm:$0xf]
        %v786 = vld [vmem:[%s1 + $0xc0] sm:$0xf]
        %v787 = vld [vmem:[%s1 + $0xc4] sm:$0xf]
        %v788 = vld [vmem:[%s1 + $0xc8] sm:$0xf]
        %v789 = vld [vmem:[%s1 + $0xcc] sm:$0xf]
        %v790 = vld [vmem:[%s2 + $0x3] sm:$0x1]
        %v791 = vlaneseq
        %v792 = vshrl.u32 %v791, 7
        %v793 = vsub.s32 0, %v792
        %v794 = vrot.slane %v790, %v793
        %v811 = vunpack.c.l.b16 %v774
        %v812 = vunpack.c.l.b16 %v775
        %v813 = vunpack.c.l.b16 %v776
        %v814 = vunpack.c.l.b16 %v777
        %v815 = vunpack.c.l.b16 %v778
        %v816 = vunpack.c.l.b16 %v779
        %v817 = vunpack.c.l.b16 %v780
        %v818 = vunpack.c.l.b16 %v781
        %v819 = vunpack.c.l.b16 %v782
        %v820 = vunpack.c.l.b16 %v783
        %v821 = vunpack.c.l.b16 %v784
        %v822 = vunpack.c.l.b16 %v785
        %v823 = vunpack.c.l.b16 %v786
        %v824 = vunpack.c.l.b16 %v787
        %v825 = vunpack.c.l.b16 %v788
        %v826 = vunpack.c.l.b16 %v789
        %v827 = vpack.c.b16 %v812, %v811
        %v828 = vpack.c.b16 %v814, %v813
        %v829 = vpack.c.b16 %v816, %v815
        %v830 = vpack.c.b16 %v818, %v817
        %v831 = vpack.c.b16 %v820, %v819
        %v832 = vpack.c.b16 %v822, %v821
        %v833 = vpack.c.b16 %v824, %v823
        %v834 = vpack.c.b16 %v826, %v825
        %843 = vmatprep.subr.bf16.mxu0 0
        %844 = vmatpush1.bf16.msra.mxu0 %v827
        %845 = vmatprep.subr.bf16.mxu0 0
        %846 = vmatpush1.bf16.msra.mxu0 %v828
        %847 = vmatprep.subr.bf16.mxu0 0
        %848 = vmatpush1.bf16.msra.mxu0 %v829
        %849 = vmatprep.subr.bf16.mxu0 0
        %850 = vmatpush1.bf16.msra.mxu0 %v830
        %851 = vmatprep.subr.bf16.mxu0 0
        %852 = vmatpush1.bf16.msra.mxu0 %v831
        %853 = vmatprep.subr.bf16.mxu0 0
        %854 = vmatpush1.bf16.msra.mxu0 %v832
        %855 = vmatprep.subr.bf16.mxu0 0
        %856 = vmatpush1.bf16.msra.mxu0 %v833
        %857 = vmatprep.subr.bf16.mxu0 0
        %858 = vmatpush1.bf16.msra.mxu0 %v834
        %859 = vmatprep.subr.bf16.mxu0 0
        %860 = vmatpush1.bf16.msra.mxu0 0
        %861 = vmatprep.subr.bf16.mxu0 0
        %862 = vmatpush1.bf16.msra.mxu0 0
        %863 = vmatprep.subr.bf16.mxu0 0
        %864 = vmatpush1.bf16.msra.mxu0 0
        %865 = vmatprep.subr.bf16.mxu0 0
        %866 = vmatpush1.bf16.msra.mxu0 0
        %867 = vmatprep.subr.bf16.mxu0 0
        %868 = vmatpush1.bf16.msra.mxu0 0
        %869 = vmatprep.subr.bf16.mxu0 0
        %870 = vmatpush1.bf16.msra.mxu0 0
        %871 = vmatprep.subr.bf16.mxu0 0
        %872 = vmatpush1.bf16.msra.mxu0 0
        %873 = vmatprep.subr.bf16.mxu0 0
        %874 = vmatpush1.bf16.msra.mxu0 0
        %875 = vmatprep.mubr.bf16.mxu0 0
        %876 = vmatmul.mubr.bf16.gmra.mrb[0].mxu0 %v766
        %v877 = vpop.f32.mrb[0].mxu0
        %v878 = vadd.f32 %v794, %v877
        %v879 = vpop.f32.mrb[0].mxu0
        %v880 = vpop.f32.mrb[0].mxu0
        %v881 = vadd.f32 %v794, %v880
        %v882 = vpop.f32.mrb[0].mxu0
        %883 = vmatprep.mubr.bf16.mxu0 0
        %884 = vmatmul.mubr.bf16.gmra.mrb[0].mxu0 %v767
        %v885 = vpop.f32.mrb[0].mxu0
        %v886 = vadd.f32 %v794, %v885
        %v887 = vpop.f32.mrb[0].mxu0
        %v888 = vpop.f32.mrb[0].mxu0
        %v889 = vadd.f32 %v794, %v888
        %v890 = vpop.f32.mrb[0].mxu0
        %891 = vmatprep.mubr.bf16.mxu0 0
        %892 = vmatmul.mubr.bf16.gmra.mrb[0].mxu0 %v768
        %v893 = vpop.f32.mrb[0].mxu0
        %v894 = vadd.f32 %v794, %v893
        %v895 = vpop.f32.mrb[0].mxu0
        %v896 = vpop.f32.mrb[0].mxu0
        %v897 = vadd.f32 %v794, %v896
        %v898 = vpop.f32.mrb[0].mxu0
        %899 = vmatprep.mubr.bf16.mxu0 0
        %900 = vmatmul.mubr.bf16.gmra.mrb[0].mxu0 %v769
        %v901 = vpop.f32.mrb[0].mxu0
        %v902 = vadd.f32 %v794, %v901
        %v903 = vpop.f32.mrb[0].mxu0
        %v904 = vpop.f32.mrb[0].mxu0
        %v905 = vadd.f32 %v794, %v904
        %v906 = vpop.f32.mrb[0].mxu0
        %907 = vmatprep.mubr.bf16.mxu0 0
        %908 = vmatmul.mubr.bf16.gmra.mrb[0].mxu0 %v770
        %v909 = vpop.f32.mrb[0].mxu0
        %v910 = vadd.f32 %v794, %v909
        %v911 = vpop.f32.mrb[0].mxu0
        %v912 = vpop.f32.mrb[0].mxu0
        %v913 = vadd.f32 %v794, %v912
        %v914 = vpop.f32.mrb[0].mxu0
        %915 = vmatprep.mubr.bf16.mxu0 0
        %916 = vmatmul.mubr.bf16.gmra.mrb[0].mxu0 %v771
        %v917 = vpop.f32.mrb[0].mxu0
        %v918 = vadd.f32 %v794, %v917
        %v919 = vpop.f32.mrb[0].mxu0
        %v920 = vpop.f32.mrb[0].mxu0
        %v921 = vadd.f32 %v794, %v920
        %v922 = vpop.f32.mrb[0].mxu0
        %923 = vmatprep.mubr.bf16.mxu0 0
        %924 = vmatmul.mubr.bf16.gmra.mrb[0].mxu0 %v772
        %v925 = vpop.f32.mrb[0].mxu0
        %v926 = vadd.f32 %v794, %v925
        %v927 = vpop.f32.mrb[0].mxu0
        %v928 = vpop.f32.mrb[0].mxu0
        %v929 = vadd.f32 %v794, %v928
        %v930 = vpop.f32.mrb[0].mxu0
        %931 = vmatprep.mubr.bf16.mxu0 0
        %932 = vmatmul.mubr.bf16.gmra.mrb[0].mxu0 %v773
        %v933 = vpop.f32.mrb[0].mxu0
        %v934 = vadd.f32 %v794, %v933
        %v935 = vpop.f32.mrb[0].mxu0
        %v936 = vpop.f32.mrb[0].mxu0
        %v937 = vadd.f32 %v794, %v936
        %v938 = vpop.f32.mrb[0].mxu0
        %939 = vdwg.mxu0
        %940 = vxpose.xlu0.b32.start [1/16] %v878, 128
        %941 = vxpose.xlu0.b32.cont [2/16] %v881, 128
        %942 = vxpose.xlu0.b32.cont [3/16] %v886, 128
        %943 = vxpose.xlu0.b32.cont [4/16] %v889, 128
        %944 = vxpose.xlu0.b32.cont [5/16] %v894, 128
        %945 = vxpose.xlu0.b32.cont [6/16] %v897, 128
        %946 = vxpose.xlu0.b32.cont [7/16] %v902, 128
        %947 = vxpose.xlu0.b32.cont [8/16] %v905, 128
        %948 = vxpose.xlu0.b32.cont [9/16] %v910, 128
        %949 = vxpose.xlu0.b32.cont [10/16] %v913, 128
        %950 = vxpose.xlu0.b32.cont [11/16] %v918, 128
        %951 = vxpose.xlu0.b32.cont [12/16] %v921, 128
        %952 = vxpose.xlu0.b32.cont [13/16] %v926, 128
        %953 = vxpose.xlu0.b32.cont [14/16] %v929, 128
        %954 = vxpose.xlu0.b32.cont [15/16] %v934, 128
        %955 = vxpose.xlu0.b32.end [16/16] %v937, 128
        %v956 = vpop.trf.xlu0
        %v957 = vpop.trf.xlu0
        %v958 = vpop.trf.xlu0
        %v959 = vpop.trf.xlu0
        %v960 = vpop.trf.xlu0
        %v961 = vpop.trf.xlu0
        %v962 = vpop.trf.xlu0
        %v963 = vpop.trf.xlu0
        %v964 = vpop.trf.xlu0
        %v965 = vpop.trf.xlu0
        %v966 = vpop.trf.xlu0
        %v967 = vpop.trf.xlu0
        %v968 = vpop.trf.xlu0
        %v969 = vpop.trf.xlu0
        %v970 = vpop.trf.xlu0
        %v971 = vpop.trf.xlu0
        %972 = vst [vmem:[%s163] sm:$0x1] %v956
        %s973 = sand.u32 %s93, 1
        %s974 = scalar_lea.sflag [#allocation3], %s973
        %s975 = sand.u32 %s93, 1
        %s976 = scalar_lea.vmem [#allocation2], %s975
        // Predicated region
        $region33: #{net_forward.1} parent=31 // pred_check
          %p977 = pneg %p103
        $region34: #{net_forward.1} parent=31 // pred_check_branch
          %979 = sbr.rel (%p977) target = $region36
        $region35: #{net_forward.1} parent=31 // pred_region
          %s981 = ssub.s32 16, 16
          %982 = vsyncadd %s974, %s981
          %s983 = smul.addr %s17, 16
          %s984 = scalar_lea.hbm %s3, %s983
          %s986 = sshll.u32 %s976, 4
          %s987 = int_to_ptr.vmem [resolvable:$true] %s986
          %989 = dma.vmem_to_hbm [thread:$0]  %s987, 16, %s984, %s974
        $region36: #{net_forward.1} parent=31 // pred_fallthru
          _
      $region32: #{net_forward.1} parent=5 // pred_fallthru
        _
      %p990 = scmp.le.s32.totalorder 2, %s12
      // Predicated region
      $region37: #{net_forward.1} parent=5 // pred_check
        %p991 = pneg %p990
      $region38: #{net_forward.1} parent=5 // pred_check_branch
        %993 = sbr.rel (%p991) target = $region40
      $region39: #{net_forward.1} parent=5 // pred_region
        %s994 = ssub.s32 %s12, 2
        // Predicated region
        $region41: #{net_forward.1} parent=39 // pred_check
          %p995 = pneg %p109
        $region42: #{net_forward.1} parent=39 // pred_check_branch
          %997 = sbr.rel (%p995) target = $region44
        $region43: #{net_forward.1} parent=39 // pred_region
          %s998 = sand.u32 %s94, 1
          %s999 = scalar_lea.sflag [#allocation3], %s998
          %s1000 = sand.u32 %s94, 1
          %s1001 = scalar_lea.vmem [#allocation2], %s1000
          %1002 = dma.done %s999, 16
        $region44: #{net_forward.1} parent=39 // pred_fallthru
          _
      $region40: #{net_forward.1} parent=5 // pred_fallthru
        _
    $region6: #{net_forward.1} parent=1 // loop_footer
      %s16 = sadd.s32 1, %s12
    $region7: #{net_forward.1} parent=1 // loop_footer_branch
      %11 = sbr.rel target = $region3
    $region8: #{net_forward.1} parent=1 // loop_exit
      _
    %1003 = vsyncpa [#allocation3], 1
    %s1004 = scalar_lea.sflag [#allocation3], 1
    %1005 = vsyncpa %s1004, 1

</llo_original>
